<compile_context>
chip_gen: v7x
topology: tpu7x:2x2x1
jax: 0.10.0
libtpu: 0.0.40
codegen_flags: <defaults>
</compile_context>

<pallas_src>
import math
import functools

import jax
import jax.numpy as jnp
from jax import lax
from jax.experimental import pallas as pl
from jax.experimental.pallas import tpu as pltpu


_MASK_VALUE = -1e30  # finite "-inf": exp() underflows to exactly 0, never NaN


# ----------------------------------------------------------------------------
# Kernel 1: fused Q/K/V projection.
#   - batch folded into the matmul M dimension (x flattened to (B*S, D_in))
#   - bf16 MXU operands, f32 accumulation, bias added in f32
#   - single lane-dense (tm, 3H) bf16 output (biggest out_spec lever; also
#     halves the HBM round-trip of the Q/K/V intermediates)
# ----------------------------------------------------------------------------
def _qkv_proj_kernel(x_ref, w_ref, b_ref, qkv_ref):
    x = x_ref[...].astype(jnp.bfloat16)                      # (tm, D)
    acc = jnp.dot(x, w_ref[...], preferred_element_type=jnp.float32)
    qkv_ref[...] = (acc + b_ref[...]).astype(qkv_ref.dtype)  # (tm, 3H)


# ----------------------------------------------------------------------------
# Kernel 2: masked scaled-dot-product attention.
#   grid = (B, S//tq, S//tk); KV axis innermost.  out (tq,H) and attn (tq,S)
#   blocks are resident across the KV axis (accumulator pattern).
# ----------------------------------------------------------------------------
def _attn_kernel(q_ref, k_ref, v_ref, out_ref, attn_ref,
                 m_sc, l_sc, acc_sc, *, tq, tk, scale):
    qi = pl.program_id(1)
    kj = pl.program_id(2)
    nkv = pl.num_programs(2)

    @pl.when(kj == 0)
    def _init():
        m_sc[...] = jnp.full_like(m_sc, -jnp.inf)
        l_sc[...] = jnp.zeros_like(l_sc)
        acc_sc[...] = jnp.zeros_like(acc_sc)
        # Raw-score staging area for the returned attention matrix.  Skipped
        # (fully masked) KV blocks stay at _MASK_VALUE and softmax to exactly 0.
        attn_ref[...] = jnp.full_like(attn_ref, _MASK_VALUE)

    # Causal skip: this KV block contributes iff its first column index is not
    # past the last row of the query tile (col_start <= row_end).
    @pl.when(kj * tk <= qi * tq + (tq - 1))
    def _process():
        # bf16 operands straight into the MXU, f32 accumulation; contract the
        # feature dims directly so no relayout/transpose of K is emitted.
        s = lax.dot_general(
            q_ref[...], k_ref[...], (((1,), (1,)), ((), ())),
            preferred_element_type=jnp.float32) * scale       # (tq, tk) f32

        # Apply the triangular mask only on blocks the diagonal passes through.
        def _mask(t):
            row = lax.broadcasted_iota(jnp.int32, t.shape, 0) + qi * tq
            col = lax.broadcasted_iota(jnp.int32, t.shape, 1) + kj * tk
            return jnp.where(col > row, _MASK_VALUE, t)

        s = lax.cond(kj * tk + (tk - 1) > qi * tq, _mask, lambda t: t, s)

        # Stage RAW (masked) scores into the resident (tq, S) attention block;
        # they are normalized with the final row max / denominator at the last
        # KV step, so the returned attention is an exact softmax.
        if tk == attn_ref.shape[-1]:
            attn_ref[...] = s
        else:
            start = pl.multiple_of(kj * tk, tk)               # lane-aligned
            attn_ref[:, pl.ds(start, tk)] = s

        # Online softmax for the output accumulator (f32).
        m_prev = m_sc[...]
        m_new = jnp.maximum(m_prev, jnp.max(s, axis=-1, keepdims=True))
        alpha = jnp.exp(m_prev - m_new)
        p = jnp.exp(s - m_new)                                # (tq, tk) f32
        l_sc[...] = alpha * l_sc[...] + jnp.sum(p, axis=-1, keepdims=True)
        acc_sc[...] = alpha * acc_sc[...] + jnp.dot(
            p.astype(jnp.bfloat16), v_ref[...],
            preferred_element_type=jnp.float32)               # bf16 MXU, f32 acc
        m_sc[...] = m_new

    @pl.when(kj == nkv - 1)
    def _finalize():
        inv_l = 1.0 / l_sc[...]          # exact division: attn is returned to caller
        out_ref[...] = (acc_sc[...] * inv_l).astype(out_ref.dtype)
        attn_ref[...] = (jnp.exp(attn_ref[...] - m_sc[...]) * inv_l
                         ).astype(attn_ref.dtype)


# ----------------------------------------------------------------------------
# Tiling / VMEM policy (generation-aware via get_tpu_info).
# ----------------------------------------------------------------------------
def _pick_tile(n, candidates):
    for t in candidates:
        if t <= n and n % t == 0:
            return t
    # TODO(synk): pad ragged dims instead of falling back to a single block.
    return n


def _vmem_capacity_bytes():
    try:
        return int(pltpu.get_tpu_info().vmem_capacity_bytes)
    except Exception:
        return 64 * 1024 * 1024          # conservative: v7x per-core VMEM


def _attn_vmem_bytes(tq, tk, S, H):
    return (
        2 * tq * S * 4                   # resident attn block (+ writeback buffer)
        + 2 * tq * H * (2 + 4)           # q (bf16) + out (f32) tiles, double-buffered
        + 2 * 2 * tk * H * 2             # k, v bf16 blocks, double-buffered
        + tq * H * 4 + 4 * tq * 4        # acc / m / l scratch
        + 4 * tq * tk * 4                # s / p / iota temporaries (slack)
    )


def _select_attn_tiles(S, H):
    cap = _vmem_capacity_bytes()
    # Keep KV-block column stores lane-aligned: tk in {256,128} or the full S.
    tk = _pick_tile(S, (256, 128))
    budget = int(cap * 0.40)             # headroom for compiler scratch / pipeline
    # tq >= 256 keeps the MXU M dimension full on v6e/v7x (2x256^2); v5e
    # (4x128^2) already saturates at 128 and the budget walk lands there for
    # long S on small-VMEM parts.
    tq = None
    for cand in (512, 256, 128, 64, 32, 16, 8):
        if cand <= S and S % cand == 0 and _attn_vmem_bytes(cand, tk, S, H) <= budget:
            tq = cand
            break
    if tq is None:
        tq = _pick_tile(S, (64, 32, 16, 8))
    est = _attn_vmem_bytes(tq, tk, S, H)
    vmem_limit = int(min(0.85 * cap, max(32 * 1024 * 1024, 2 * est)))
    return tq, tk, vmem_limit


def masked_sdpa(x, wq, wk, wv, bq, bk, bv):
    """x: (B, S, D_in); w*: (D_in, H); b*: (H,). Returns (out (B,S,H), attn (B,S,S))."""
    B, S, D = x.shape
    H = wq.shape[1]
    cap = _vmem_capacity_bytes()

    # --- fused QKV projection over the flattened batch*seq dimension --------
    w_qkv = jnp.concatenate([wq, wk, wv], axis=1).astype(jnp.bfloat16)      # (D, 3H)
    b_qkv = jnp.concatenate([bq, bk, bv], axis=0).reshape(1, 3 * H).astype(jnp.float32)
    M = B * S
    x2 = x.reshape(M, D)
    tm = _pick_tile(M, (512, 256, 128, 64, 32, 16, 8))

    proj_est = 2 * (tm * D * 4 + tm * 3 * H * 2) + D * 3 * H * 2 + 3 * H * 4
    proj_limit = int(min(0.85 * cap, max(32 * 1024 * 1024, 2 * proj_est)))

    qkv2 = pl.pallas_call(
        _qkv_proj_kernel,
        out_shape=jax.ShapeDtypeStruct((M, 3 * H), jnp.bfloat16),
        grid_spec=pltpu.PrefetchScalarGridSpec(
            num_scalar_prefetch=0,
            grid=(M // tm,),
            in_specs=[
                pl.BlockSpec((tm, D), lambda i: (i, 0)),
                pl.BlockSpec((D, 3 * H), lambda i: (0, 0)),
                pl.BlockSpec((1, 3 * H), lambda i: (0, 0)),
            ],
            out_specs=pl.BlockSpec((tm, 3 * H), lambda i: (i, 0)),
        ),
        compiler_params=pltpu.CompilerParams(
            dimension_semantics=("parallel",),
            vmem_limit_bytes=proj_limit),
    )(x2, w_qkv, b_qkv)

    # Glue-level split of the fused projection (lane-dense store in-kernel).
    qkv = qkv2.reshape(B, S, 3 * H)
    q = qkv[..., 0:H]                # bf16 (B, S, H)
    k = qkv[..., H:2 * H]
    v = qkv[..., 2 * H:3 * H]

    # --- attention: grid over (batch, query blocks, kv blocks) ---------------
    tq, tk, vmem_limit = _select_attn_tiles(S, H)
    scale = 1.0 / math.sqrt(float(H))

    # TODO(synk): attention_dropout (None by default in the module) is not applied.
    out, attn = pl.pallas_call(
        functools.partial(_attn_kernel, tq=tq, tk=tk, scale=scale),
        out_shape=(
            jax.ShapeDtypeStruct((B, S, H), jnp.float32),
            jax.ShapeDtypeStruct((B, S, S), jnp.float32),
        ),
        grid_spec=pltpu.PrefetchScalarGridSpec(
            num_scalar_prefetch=0,
            grid=(B, S // tq, S // tk),
            in_specs=[
                pl.BlockSpec((None, tq, H), lambda b, i, j: (b, i, 0)),
                pl.BlockSpec((None, tk, H), lambda b, i, j: (b, j, 0)),
                pl.BlockSpec((None, tk, H), lambda b, i, j: (b, j, 0)),
            ],
            out_specs=[
                pl.BlockSpec((None, tq, H), lambda b, i, j: (b, i, 0)),
                pl.BlockSpec((None, tq, S), lambda b, i, j: (b, i, 0)),
            ],
            scratch_shapes=[
                pltpu.VMEM((tq, 1), jnp.float32),   # running max
                pltpu.VMEM((tq, 1), jnp.float32),   # running denom
                pltpu.VMEM((tq, H), jnp.float32),   # output accumulator
            ],
        ),
        compiler_params=pltpu.CompilerParams(
            dimension_semantics=("parallel", "parallel", "arbitrary"),
            vmem_limit_bytes=vmem_limit),
    )(q, k, v)
    return out, attn


# ----------------------------------------------------------------------------
# Host-side glue: spectral_norm parametrization (exact sigma), init, reference.
# ----------------------------------------------------------------------------
def _spectral_normalize(w):
    """Divide (H, D_in) weight by its largest singular value (spectral_norm)."""
    sigma = jnp.linalg.norm(w, ord=2)
    return w / sigma


def _init_linear(key, in_features, out_features):
    """Deterministic init mimicking nn.Linear's uniform(-1/sqrt(in), 1/sqrt(in))."""
    kw, kb = jax.random.split(key)
    bound = 1.0 / math.sqrt(in_features)
    w = jax.random.uniform(kw, (out_features, in_features),
                           minval=-bound, maxval=bound, dtype=jnp.float32)
    b = jax.random.uniform(kb, (out_features,),
                           minval=-bound, maxval=bound, dtype=jnp.float32)
    return w, b


def reference_sdpa(x, wq, wk, wv, bq, bk, bv):
    q = x @ wq + bq
    k = x @ wk + bk
    v = x @ wv + bv
    d_k = q.shape[-1]
    scores = jnp.einsum("bqd,bkd->bqk", q, k) / math.sqrt(d_k)
    s = q.shape[1]
    mask = jnp.triu(jnp.ones((s, s)), k=1)
    scores = jnp.where(mask == 1, -jnp.inf, scores)
    attn = jax.nn.softmax(scores, axis=-1)
    return attn @ v, attn


if __name__ == "__main__":
    B, S, D_IN, HIDDEN = 2, 8, 32, 32

    root = jax.random.PRNGKey(0)
    kx, kq, kk, kv = jax.random.split(root, 4)

    x = jax.random.normal(kx, (B, S, D_IN), dtype=jnp.float32)

    wq_raw, bq = _init_linear(kq, D_IN, HIDDEN)
    wk_raw, bk = _init_linear(kk, D_IN, HIDDEN)
    wv_raw, bv = _init_linear(kv, D_IN, HIDDEN)

    # spectral_norm (if_lip=True): weight / sigma_max, computed exactly in glue JAX
    wq = _spectral_normalize(wq_raw).T  # (D_in, H)
    wk = _spectral_normalize(wk_raw).T
    wv = _spectral_normalize(wv_raw).T

    out, attn = masked_sdpa(x, wq, wk, wv, bq, bk, bv)
    jax.block_until_ready((out, attn))

    # Correctness check against a pure-JAX f32 reference.  Tolerances account
    # for bf16 MXU operands (projection, QK^T and PV) with f32 accumulation.
    out_ref, attn_ref = reference_sdpa(x, wq, wk, wv, bq, bk, bv)
    assert jnp.allclose(attn, attn_ref, atol=5e-2, rtol=5e-2), "attention mismatch"
    assert jnp.allclose(out, out_ref, atol=8e-2, rtol=8e-2), "output mismatch"

    print("KERNEL_OK")
</pallas_src>

<mosaic_0001>
module attributes {stable_mosaic.version = 11 : i64} {
  func.func @_qkv_proj_kernel(%arg0: i32, %arg1: memref<16x32xf32, #tpu.memory_space<vmem>>, %arg2: memref<32x96xbf16, #tpu.memory_space<vmem>>, %arg3: memref<1x96xf32, #tpu.memory_space<vmem>>, %arg4: memref<16x96xbf16, #tpu.memory_space<vmem>>) attributes {dimension_semantics = [#tpu.dimension_semantics<parallel>], iteration_bounds = array<i64: 1>, scalar_prefetch = 0 : i64, scratch_operands = 0 : i64, tpu.core_type = #tpu.core_type<tc>, window_params = [{transform_indices = @transform_0, window_bounds = array<i64: 16, 32>}, {pipeline_mode = #tpu.pipeline_mode<synchronous>, transform_indices = @transform_1, window_bounds = array<i64: 32, 96>}, {pipeline_mode = #tpu.pipeline_mode<synchronous>, transform_indices = @transform_2, window_bounds = array<i64: 1, 96>}, {transform_indices = @transform_3, window_bounds = array<i64: 16, 96>}]} {
    %c0 = arith.constant 0 : index
    %c0_0 = arith.constant 0 : index
    %0 = vector.load %arg1[%c0, %c0_0] : memref<16x32xf32, #tpu.memory_space<vmem>>, vector<16x32xf32>
    %1 = arith.truncf %0 : vector<16x32xf32> to vector<16x32xbf16>
    %c0_1 = arith.constant 0 : index
    %c0_2 = arith.constant 0 : index
    %2 = vector.load %arg2[%c0_1, %c0_2] : memref<32x96xbf16, #tpu.memory_space<vmem>>, vector<32x96xbf16>
    %cst = arith.constant dense<0.000000e+00> : vector<16x96xf32>
    %3 = tpu.matmul %1, %2, %cst {dimension_numbers = #tpu.dot_dimension_numbers<[1], [0], [0], [1], [0, 0, 1, 1], [], []>} : vector<16x32xbf16>, vector<32x96xbf16>, vector<16x96xf32> -> vector<16x96xf32>
    %c0_3 = arith.constant 0 : index
    %c0_4 = arith.constant 0 : index
    %4 = vector.load %arg3[%c0_3, %c0_4] : memref<1x96xf32, #tpu.memory_space<vmem>>, vector<1x96xf32>
    %5 = vector.broadcast %4 : vector<1x96xf32> to vector<16x96xf32>
    %6 = arith.addf %3, %5 : vector<16x96xf32>
    %7 = arith.truncf %6 : vector<16x96xf32> to vector<16x96xbf16>
    %c0_5 = arith.constant 0 : index
    %c0_6 = arith.constant 0 : index
    %8 = vector.load %arg4[%c0_5, %c0_6] : memref<16x96xbf16, #tpu.memory_space<vmem>>, vector<16x96xbf16>
    tpu.vector_store %arg4[%c0_5, %c0_6], %7 {strides = array<i32>} : memref<16x96xbf16, #tpu.memory_space<vmem>>, vector<16x96xbf16>,
    return
  }
  func.func @transform_0(%arg0: i32) -> (i32, i32) {
    %c0_i32 = arith.constant 0 : i32
    %c0_i32_0 = arith.constant 0 : i32
    return %arg0, %c0_i32 : i32, i32
  }
  func.func @transform_1(%arg0: i32) -> (i32, i32) {
    %c0_i32 = arith.constant 0 : i32
    %c0_i32_0 = arith.constant 0 : i32
    %c0_i32_1 = arith.constant 0 : i32
    return %c0_i32, %c0_i32_0 : i32, i32
  }
  func.func @transform_2(%arg0: i32) -> (i32, i32) {
    %c0_i32 = arith.constant 0 : i32
    %c0_i32_0 = arith.constant 0 : i32
    %c0_i32_1 = arith.constant 0 : i32
    return %c0_i32, %c0_i32_0 : i32, i32
  }
  func.func @transform_3(%arg0: i32) -> (i32, i32) {
    %c0_i32 = arith.constant 0 : i32
    %c0_i32_0 = arith.constant 0 : i32
    return %arg0, %c0_i32 : i32, i32
  }
}

</mosaic_0001>

<llo_original>
// kernel: tpu_custom_call.1
$region0: #{tpu_custom_call.1}
  #allocation0 [shape = 'u32[]', space=smem, size = 0x4, offset = 0x4, fixed_abs, tag = 'smem constant byte address 0x4 - core index']
  #allocation1 [shape = 'u32[144,128]{1,0:T(1,128)}', space=vmem, size = 0x12000, scoped, tag = 'internal scratch']
  %s0 = inlined_call_operand.hbm [shape: f32[16,32], index: 0, kind: input, shape index: {}]
  %s1 = inlined_call_operand.hbm [shape: bf16[32,96], index: 1, kind: input, shape index: {}]
  %s2 = inlined_call_operand.vmem [shape: f32[1,96], index: 2, kind: input, shape index: {}]
  %s3 = inlined_call_operand.hbm [shape: bf16[16,96], index: 3, kind: output, shape index: {}]
  %s4 = sld [smem:[#allocation0]]
  $region30: #{tpu_custom_call.1} parent=0
    _
  %s6 = ssub.s32 1, %s4
  %s7 = scalar_select 0, %s6, %s4
  $region1: #{tpu_custom_call.1} parent=0
    #allocation2 [shape = 'u8[8192]{0}', space=vmem, size = 0x2000, scoped, tag = 'input window, operand 0, single buffered']
    #allocation3 [shape = 's32[1]{0}', space=sflag, size = 0x4, scoped, tag = 'scoped memory for tpu_custom_call.1']
    #allocation4 [shape = 's32[1]{0}', space=sflag, size = 0x4, scoped, tag = 'scoped memory for tpu_custom_call.1']
    #allocation5 [shape = 'u8[8192]{0}', space=vmem, size = 0x2000, scoped, tag = 'input window, operand 1, single buffered']
    #allocation6 [shape = 's32[1]{0}', space=sflag, size = 0x4, scoped, tag = 'scoped memory for tpu_custom_call.1']
    #allocation7 [shape = 'u8[4096]{0}', space=vmem, size = 0x1000, scoped, tag = 'output window, operand 0, single buffered']
    %8 = vsyncpa [#allocation3], 0
    %9 = vsyncpa [#allocation6], 0
    %10 = vsyncpa [#allocation4], 0
    // Predicated region
    $region2: #{tpu_custom_call.1} parent=1 // pred_check
      _
    $region3: #{tpu_custom_call.1} parent=1 // pred_check_branch
      %12 = sbr.rel (0) target = $region5
    $region4: #{tpu_custom_call.1} parent=1 // pred_region
      %s14 = ssub.s32 256, 256
      %15 = vsyncadd [#allocation3], %s14
      %s16 = sshll.u32 [#allocation2], 4
      %s17 = int_to_ptr.vmem [resolvable:$true] %s16
      %22 = dma.hbm_to_vmem [thread:$0]  %s0, 256, %s17, [#allocation3], 128, 128, 8
    $region5: #{tpu_custom_call.1} parent=1 // pred_fallthru
      _
    // Predicated region
    $region6: #{tpu_custom_call.1} parent=1 // pred_check
      _
    $region7: #{tpu_custom_call.1} parent=1 // pred_check_branch
      %24 = sbr.rel (0) target = $region9
    $region8: #{tpu_custom_call.1} parent=1 // pred_region
      %s26 = ssub.s32 256, 256
      %27 = vsyncadd [#allocation6], %s26
      %s28 = sshll.u32 [#allocation5], 4
      %s29 = int_to_ptr.vmem [resolvable:$true] %s28
      %34 = dma.hbm_to_vmem [thread:$0]  %s1, 256, %s29, [#allocation6], 64, 64, 4
    $region9: #{tpu_custom_call.1} parent=1 // pred_fallthru
      _
    // Predicated region
    $region10: #{tpu_custom_call.1} parent=1 // pred_check
      _
    $region11: #{tpu_custom_call.1} parent=1 // pred_check_branch
      %36 = sbr.rel (0) target = $region13
    $region12: #{tpu_custom_call.1} parent=1 // pred_region
      _
    $region13: #{tpu_custom_call.1} parent=1 // pred_fallthru
      _
    // Predicated region
    $region14: #{tpu_custom_call.1} parent=1 // pred_check
      _
    $region15: #{tpu_custom_call.1} parent=1 // pred_check_branch
      %38 = sbr.rel (0) target = $region17
    $region16: #{tpu_custom_call.1} parent=1 // pred_region
      %39 = dma.done [#allocation3], 256
    $region17: #{tpu_custom_call.1} parent=1 // pred_fallthru
      _
    // Predicated region
    $region18: #{tpu_custom_call.1} parent=1 // pred_check
      _
    $region19: #{tpu_custom_call.1} parent=1 // pred_check_branch
      %41 = sbr.rel (0) target = $region21
    $region20: #{tpu_custom_call.1} parent=1 // pred_region
      %42 = dma.done [#allocation6], 256
    $region21: #{tpu_custom_call.1} parent=1 // pred_fallthru
      _
    %v44 = vld [vmem:[#allocation2] sm:$0xff]
    %v45 = vld [vmem:[#allocation2 + $0x8] sm:$0xff]
    %v46 = vpack.c.bf16 %v45, %v44
    %v47 = vld [vmem:[#allocation5] sm:$0xf]
    %v48 = vld [vmem:[#allocation5 + $0x4] sm:$0xf]
    %v49 = vld [vmem:[#allocation5 + $0x8] sm:$0xf]
    %v50 = vld [vmem:[#allocation5 + $0xc] sm:$0xf]
    %v51 = vld [vmem:[%s2] sm:$0x1]
    %v53 = vlaneseq
    %v54 = vshrl.u32 %v53, 7
    %v55 = vsub.s32 0, %v54
    %v56 = vrot.slane %v51, %v55
    %v62 = vunpack.c.l.b16 %v47
    %v63 = vunpack.c.l.b16 %v48
    %v64 = vunpack.c.l.b16 %v49
    %v65 = vunpack.c.l.b16 %v50
    %v66 = vpack.c.b16 %v63, %v62
    %v67 = vpack.c.b16 %v65, %v64
    %vm70 = vcmask 261120
    %v72 = vsel %vm70, %v46, 0
    %74 = vmatprep.subr.bf16.mxu0 0
    %75 = vmatpush1.bf16.msra.mxu0 %v66
    %76 = vmatprep.subr.bf16.mxu0 0
    %77 = vmatpush1.bf16.msra.mxu0 %v67
    %78 = vmatprep.subr.bf16.mxu0 0
    %79 = vmatpush1.bf16.msra.mxu0 0
    %80 = vmatprep.subr.bf16.mxu0 0
    %81 = vmatpush1.bf16.msra.mxu0 0
    %82 = vmatprep.subr.bf16.mxu0 0
    %83 = vmatpush1.bf16.msra.mxu0 0
    %84 = vmatprep.subr.bf16.mxu0 0
    %85 = vmatpush1.bf16.msra.mxu0 0
    %86 = vmatprep.subr.bf16.mxu0 0
    %87 = vmatpush1.bf16.msra.mxu0 0
    %88 = vmatprep.subr.bf16.mxu0 0
    %89 = vmatpush1.bf16.msra.mxu0 0
    %90 = vmatprep.subr.bf16.mxu0 0
    %91 = vmatpush1.bf16.msra.mxu0 0
    %92 = vmatprep.subr.bf16.mxu0 0
    %93 = vmatpush1.bf16.msra.mxu0 0
    %94 = vmatprep.subr.bf16.mxu0 0
    %95 = vmatpush1.bf16.msra.mxu0 0
    %96 = vmatprep.subr.bf16.mxu0 0
    %97 = vmatpush1.bf16.msra.mxu0 0
    %98 = vmatprep.subr.bf16.mxu0 0
    %99 = vmatpush1.bf16.msra.mxu0 0
    %100 = vmatprep.subr.bf16.mxu0 0
    %101 = vmatpush1.bf16.msra.mxu0 0
    %102 = vmatprep.subr.bf16.mxu0 0
    %103 = vmatpush1.bf16.msra.mxu0 0
    %104 = vmatprep.subr.bf16.mxu0 0
    %105 = vmatpush1.bf16.msra.mxu0 0
    %106 = vmatprep.mubr.bf16.mxu0 0
    %107 = vmatmul.mubr.bf16.gmra.mrb[0].mxu0 %v72
    %v108 = vpop.f32.mrb[0].mxu0
    %v109 = vadd.f32 %v56, %v108
    %v110 = vpop.f32.mrb[0].mxu0
    %v111 = vpop.f32.mrb[0].mxu0
    %v112 = vadd.f32 %v56, %v111
    %v113 = vpop.f32.mrb[0].mxu0
    %114 = vdwg.mxu0
    %v115 = vpack.c.bf16 %v112, %v109
    %v117 = vunpack.c.l.b16 %v115
    %v118 = vunpack.c.h.b16 %v115
    %v119 = vpack.c.b16 %v117, %v117
    %v120 = vpack.c.b16 %v118, %v118
    %vm123 = vcmask 781312
    %124 = vst.msk [vmem:[#allocation7] sm:$0xf] %vm123, %v119
    %125 = vst.msk [vmem:[#allocation7 + $0x4] sm:$0xf] %vm123, %v120
    // Predicated region
    $region22: #{tpu_custom_call.1} parent=1 // pred_check
      _
    $region23: #{tpu_custom_call.1} parent=1 // pred_check_branch
      %127 = sbr.rel (0) target = $region25
    $region24: #{tpu_custom_call.1} parent=1 // pred_region
      %s129 = ssub.s32 128, 128
      %130 = vsyncadd [#allocation4], %s129
      %s131 = sshll.u32 [#allocation7], 4
      %s132 = int_to_ptr.vmem [resolvable:$true] %s131
      %137 = dma.vmem_to_hbm [thread:$0]  %s132, 128, %s3, [#allocation4], 64, 64, 4
    $region25: #{tpu_custom_call.1} parent=1 // pred_fallthru
      _
    // Predicated region
    $region26: #{tpu_custom_call.1} parent=1 // pred_check
      _
    $region27: #{tpu_custom_call.1} parent=1 // pred_check_branch
      %139 = sbr.rel (0) target = $region29
    $region28: #{tpu_custom_call.1} parent=1 // pred_region
      %140 = dma.done [#allocation4], 128
    $region29: #{tpu_custom_call.1} parent=1 // pred_fallthru
      _
    %141 = vsyncpa [#allocation3], 1
    %142 = vsyncpa [#allocation6], 1
    %143 = vsyncpa [#allocation4], 1

</llo_original>
